<compile_context>
chip_gen: v7x
topology: tpu7x:2x2x1
jax: 0.10.0
libtpu: 0.0.40
codegen_flags: <defaults>
</compile_context>

<pallas_src>
import jax
import jax.numpy as jnp
from jax.experimental import pallas as pl
from jax.experimental.pallas import tpu as pltpu

D_IN, D_H1, D_H2, D_OUT = 256, 160, 80, 10

# Per-row, per-step double-buffered VMEM footprint (f32, lane-padded to 128):
#   x 256 + fc1 (160->256) + fc2 (80->128) + out (10->128)  = 768 words = 3 KiB, x2 buffers.
_VMEM_BYTES_PER_ROW = 2 * 4 * (256 + 256 + 128 + 128)          # 6 KiB / row
_VMEM_RESERVE = 2 << 20                                        # weights + compiler scratch


def _round_up(x, m):
    return ((x + m - 1) // m) * m


def _default_vmem_limit_bytes():
    """Generation-aware scoped-VMEM limit: half the chip's VMEM, capped at 64 MiB."""
    try:
        cap = pltpu.get_tpu_info().vmem_capacity_bytes
    except Exception:
        cap = 64 << 20  # conservative fallback (v7x per-TC VMEM)
    return min(cap // 2, 64 << 20)


def fcnn_kernel(x_ref, w1_ref, b1_ref, w2_ref, b2_ref, w3_ref, b3_ref,
                fc1_ref, fc2_ref, out_ref):
    x = x_ref[...]

    # Layer 1: Linear(256 -> 160) + ReLU  (MXU matmul, f32 accumulate)
    h1 = jnp.dot(x, w1_ref[...], preferred_element_type=jnp.float32) + b1_ref[...]
    h1 = jnp.maximum(h1, 0.0)
    fc1_ref[...] = h1.astype(fc1_ref.dtype)

    # Layer 2: Linear(160 -> 80) + ReLU
    h2 = jnp.dot(h1, w2_ref[...], preferred_element_type=jnp.float32) + b2_ref[...]
    h2 = jnp.maximum(h2, 0.0)
    fc2_ref[...] = h2.astype(fc2_ref.dtype)

    # Layer 3: Linear(80 -> 10) + Sigmoid (exp + approx reciprocal -> both on the EUP slot)
    z = jnp.dot(h2, w3_ref[...], preferred_element_type=jnp.float32) + b3_ref[...]
    out_ref[...] = pl.reciprocal(1.0 + jnp.exp(-z), approx=True).astype(out_ref.dtype)


def fcnn_forward(x, params, *, block_rows=4096, vmem_limit_bytes=None):
    """x: [B, 256] float32. params: weights [in, out] (torch weight transposed), biases [1, out]."""
    B = x.shape[0]
    w1, b1 = params["w1"], params["b1"]
    w2, b2 = params["w2"], params["b2"]
    w3, b3 = params["w3"], params["b3"]

    if vmem_limit_bytes is None:
        vmem_limit_bytes = _default_vmem_limit_bytes()

    # --- Batch tile selection (generation-aware, dual-TC aware) ---------------
    # 1) Never exceed what the scoped VMEM limit can double-buffer.
    tm_vmem_cap = max(8, ((vmem_limit_bytes - _VMEM_RESERVE) // _VMEM_BYTES_PER_ROW) // 8 * 8)
    # 2) Keep the grid at least ~4 steps long (2 per TensorCore on v7x) before maxing tm.
    tm_grid_cap = max(8, _round_up(pl.cdiv(B, 4), 8))
    tm = max(8, min(block_rows, tm_vmem_cap, tm_grid_cap))
    tm = _round_up(tm, 8)

    # Ragged last block is handled by Pallas (OOB reads ignored downstream, OOB writes masked):
    # no host-side jnp.pad of x and no output[:B] slicing -> no extra HBM round trips.
    grid = (pl.cdiv(B, tm),)

    row_spec = lambda n: pl.BlockSpec((tm, n), lambda i: (i, 0))      # tiled over batch
    const_spec = lambda a: pl.BlockSpec(a.shape, lambda i: (0, 0))    # VMEM-resident weights

    flops = 2 * B * (D_IN * D_H1 + D_H1 * D_H2 + D_H2 * D_OUT)
    bytes_accessed = 4 * (B * (D_IN + D_H1 + D_H2 + D_OUT)
                          + D_IN * D_H1 + D_H1 * D_H2 + D_H2 * D_OUT
                          + D_H1 + D_H2 + D_OUT)

    fc1, fc2, out = pl.pallas_call(
        fcnn_kernel,
        out_shape=(
            jax.ShapeDtypeStruct((B, D_H1), x.dtype),
            jax.ShapeDtypeStruct((B, D_H2), x.dtype),
            jax.ShapeDtypeStruct((B, D_OUT), x.dtype),
        ),
        grid=grid,
        in_specs=[
            row_spec(D_IN),
            const_spec(w1), const_spec(b1),
            const_spec(w2), const_spec(b2),
            const_spec(w3), const_spec(b3),
        ],
        out_specs=(row_spec(D_H1), row_spec(D_H2), row_spec(D_OUT)),
        compiler_params=pltpu.CompilerParams(
            dimension_semantics=("parallel",),          # shard batch across TCs on v7x
            vmem_limit_bytes=vmem_limit_bytes,
        ),
        cost_estimate=pl.CostEstimate(
            flops=flops,
            transcendentals=2 * B * D_OUT,              # exp + reciprocal
            bytes_accessed=bytes_accessed,
        ),
    )(x, w1, b1, w2, b2, w3, b3)

    return fc1, fc2, out


def init_params(key):
    """Deterministic init mimicking torch.nn.Linear default (U[-1/sqrt(in), 1/sqrt(in)]).
    Weights stored as [in, out] (i.e. torch weight transposed) for x @ W."""
    dims = [(D_IN, D_H1), (D_H1, D_H2), (D_H2, D_OUT)]
    params = {}
    for i, (fin, fout) in enumerate(dims, start=1):
        key, kw, kb = jax.random.split(key, 3)
        bound = 1.0 / jnp.sqrt(jnp.float32(fin))
        params[f"w{i}"] = jax.random.uniform(kw, (fin, fout), jnp.float32, -bound, bound)
        params[f"b{i}"] = jax.random.uniform(kb, (1, fout), jnp.float32, -bound, bound)
    return params


def _reference(x, params):
    r1 = jnp.maximum(x @ params["w1"] + params["b1"], 0.0)
    r2 = jnp.maximum(r1 @ params["w2"] + params["b2"], 0.0)
    r3 = jax.nn.sigmoid(r2 @ params["w3"] + params["b3"])
    return r1, r2, r3


if __name__ == "__main__":
    key = jax.random.PRNGKey(0)
    key, kx1, kx2 = jax.random.split(key, 3)
    params = init_params(key)

    # Case 1: small single-tile batch (tm clamps to 8, grid=(1,)).
    B1 = 8
    x1 = jax.random.normal(kx1, (B1, D_IN), jnp.float32)
    fc1, fc2, output = fcnn_forward(x1, params)
    jax.block_until_ready((fc1, fc2, output))
    r1, r2, r3 = _reference(x1, params)
    assert fc1.shape == (B1, D_H1) and fc2.shape == (B1, D_H2) and output.shape == (B1, D_OUT)
    assert jnp.allclose(fc1, r1, atol=1e-5)
    assert jnp.allclose(fc2, r2, atol=1e-5)
    assert jnp.allclose(output, r3, atol=5e-3)   # approx=True reciprocal -> looser tolerance

    # Case 2: multi-step grid with a ragged final block (100 rows, tm=32 -> grid=(4,),
    # last block holds only 4 valid rows: exercises Pallas OOB write masking, no padding).
    B2 = 100
    x2 = jax.random.normal(kx2, (B2, D_IN), jnp.float32)
    fc1b, fc2b, outb = fcnn_forward(x2, params, block_rows=32)
    jax.block_until_ready((fc1b, fc2b, outb))
    q1, q2, q3 = _reference(x2, params)
    assert fc1b.shape == (B2, D_H1) and fc2b.shape == (B2, D_H2) and outb.shape == (B2, D_OUT)
    assert jnp.allclose(fc1b, q1, atol=1e-5)
    assert jnp.allclose(fc2b, q2, atol=1e-5)
    assert jnp.allclose(outb, q3, atol=5e-3)

    print("KERNEL_OK")
</pallas_src>

<mosaic_0001>
module attributes {stable_mosaic.version = 11 : i64} {
  func.func @fcnn_kernel(%arg0: i32, %arg1: memref<8x256xf32, #tpu.memory_space<vmem>>, %arg2: memref<256x160xf32, #tpu.memory_space<vmem>>, %arg3: memref<1x160xf32, #tpu.memory_space<vmem>>, %arg4: memref<160x80xf32, #tpu.memory_space<vmem>>, %arg5: memref<1x80xf32, #tpu.memory_space<vmem>>, %arg6: memref<80x10xf32, #tpu.memory_space<vmem>>, %arg7: memref<1x10xf32, #tpu.memory_space<vmem>>, %arg8: memref<8x160xf32, #tpu.memory_space<vmem>>, %arg9: memref<8x80xf32, #tpu.memory_space<vmem>>, %arg10: memref<8x10xf32, #tpu.memory_space<vmem>>) attributes {dimension_semantics = [#tpu.dimension_semantics<parallel>], iteration_bounds = array<i64: 1>, scalar_prefetch = 0 : i64, scratch_operands = 0 : i64, tpu.core_type = #tpu.core_type<tc>, window_params = [{transform_indices = @transform_0, window_bounds = array<i64: 8, 256>}, {pipeline_mode = #tpu.pipeline_mode<synchronous>, transform_indices = @transform_1, window_bounds = array<i64: 256, 160>}, {pipeline_mode = #tpu.pipeline_mode<synchronous>, transform_indices = @transform_2, window_bounds = array<i64: 1, 160>}, {pipeline_mode = #tpu.pipeline_mode<synchronous>, transform_indices = @transform_3, window_bounds = array<i64: 160, 80>}, {pipeline_mode = #tpu.pipeline_mode<synchronous>, transform_indices = @transform_4, window_bounds = array<i64: 1, 80>}, {pipeline_mode = #tpu.pipeline_mode<synchronous>, transform_indices = @transform_5, window_bounds = array<i64: 80, 10>}, {pipeline_mode = #tpu.pipeline_mode<synchronous>, transform_indices = @transform_6, window_bounds = array<i64: 1, 10>}, {transform_indices = @transform_7, window_bounds = array<i64: 8, 160>}, {transform_indices = @transform_8, window_bounds = array<i64: 8, 80>}, {transform_indices = @transform_9, window_bounds = array<i64: 8, 10>}]} {
    %c0 = arith.constant 0 : index
    %c0_0 = arith.constant 0 : index
    %0 = vector.load %arg1[%c0, %c0_0] : memref<8x256xf32, #tpu.memory_space<vmem>>, vector<8x256xf32>
    %c0_1 = arith.constant 0 : index
    %c0_2 = arith.constant 0 : index
    %1 = vector.load %arg2[%c0_1, %c0_2] : memref<256x160xf32, #tpu.memory_space<vmem>>, vector<256x160xf32>
    %cst = arith.constant dense<0.000000e+00> : vector<8x160xf32>
    %2 = tpu.matmul %0, %1, %cst {dimension_numbers = #tpu.dot_dimension_numbers<[1], [0], [0], [1], [0, 0, 1, 1], [], []>} : vector<8x256xf32>, vector<256x160xf32>, vector<8x160xf32> -> vector<8x160xf32>
    %c0_3 = arith.constant 0 : index
    %c0_4 = arith.constant 0 : index
    %3 = vector.load %arg3[%c0_3, %c0_4] : memref<1x160xf32, #tpu.memory_space<vmem>>, vector<1x160xf32>
    %4 = vector.broadcast %3 : vector<1x160xf32> to vector<8x160xf32>
    %5 = arith.addf %2, %4 : vector<8x160xf32>
    %cst_5 = arith.constant 0.000000e+00 : f32
    %6 = vector.broadcast %cst_5 : f32 to vector<8x160xf32>
    %7 = arith.maximumf %5, %6 : vector<8x160xf32>
    %c0_6 = arith.constant 0 : index
    %c0_7 = arith.constant 0 : index
    %8 = vector.load %arg8[%c0_6, %c0_7] : memref<8x160xf32, #tpu.memory_space<vmem>>, vector<8x160xf32>
    tpu.vector_store %arg8[%c0_6, %c0_7], %7 {strides = array<i32>} : memref<8x160xf32, #tpu.memory_space<vmem>>, vector<8x160xf32>,
    %c0_8 = arith.constant 0 : index
    %c0_9 = arith.constant 0 : index
    %9 = vector.load %arg4[%c0_8, %c0_9] : memref<160x80xf32, #tpu.memory_space<vmem>>, vector<160x80xf32>
    %cst_10 = arith.constant dense<0.000000e+00> : vector<8x80xf32>
    %10 = tpu.matmul %7, %9, %cst_10 {dimension_numbers = #tpu.dot_dimension_numbers<[1], [0], [0], [1], [0, 0, 1, 1], [], []>} : vector<8x160xf32>, vector<160x80xf32>, vector<8x80xf32> -> vector<8x80xf32>
    %c0_11 = arith.constant 0 : index
    %c0_12 = arith.constant 0 : index
    %11 = vector.load %arg5[%c0_11, %c0_12] : memref<1x80xf32, #tpu.memory_space<vmem>>, vector<1x80xf32>
    %12 = vector.broadcast %11 : vector<1x80xf32> to vector<8x80xf32>
    %13 = arith.addf %10, %12 : vector<8x80xf32>
    %cst_13 = arith.constant 0.000000e+00 : f32
    %14 = vector.broadcast %cst_13 : f32 to vector<8x80xf32>
    %15 = arith.maximumf %13, %14 : vector<8x80xf32>
    %c0_14 = arith.constant 0 : index
    %c0_15 = arith.constant 0 : index
    %16 = vector.load %arg9[%c0_14, %c0_15] : memref<8x80xf32, #tpu.memory_space<vmem>>, vector<8x80xf32>
    tpu.vector_store %arg9[%c0_14, %c0_15], %15 {strides = array<i32>} : memref<8x80xf32, #tpu.memory_space<vmem>>, vector<8x80xf32>,
    %c0_16 = arith.constant 0 : index
    %c0_17 = arith.constant 0 : index
    %17 = vector.load %arg6[%c0_16, %c0_17] : memref<80x10xf32, #tpu.memory_space<vmem>>, vector<80x10xf32>
    %cst_18 = arith.constant dense<0.000000e+00> : vector<8x10xf32>
    %18 = tpu.matmul %15, %17, %cst_18 {dimension_numbers = #tpu.dot_dimension_numbers<[1], [0], [0], [1], [0, 0, 1, 1], [], []>} : vector<8x80xf32>, vector<80x10xf32>, vector<8x10xf32> -> vector<8x10xf32>
    %c0_19 = arith.constant 0 : index
    %c0_20 = arith.constant 0 : index
    %19 = vector.load %arg7[%c0_19, %c0_20] : memref<1x10xf32, #tpu.memory_space<vmem>>, vector<1x10xf32>
    %20 = vector.broadcast %19 : vector<1x10xf32> to vector<8x10xf32>
    %21 = arith.addf %18, %20 : vector<8x10xf32>
    %cst_21 = arith.constant 0.000000e+00 : f32
    %22 = vector.broadcast %cst_21 : f32 to vector<8x10xf32>
    %23 = arith.subf %22, %21 : vector<8x10xf32>
    %24 = math.exp %23 : vector<8x10xf32>
    %cst_22 = arith.constant 1.000000e+00 : f32
    %25 = vector.broadcast %cst_22 : f32 to vector<8x10xf32>
    %26 = arith.addf %25, %24 : vector<8x10xf32>
    %27 = tpu.reciprocal %26 {approx = true} : vector<8x10xf32> -> vector<8x10xf32>
    %c0_23 = arith.constant 0 : index
    %c0_24 = arith.constant 0 : index
    %28 = vector.load %arg10[%c0_23, %c0_24] : memref<8x10xf32, #tpu.memory_space<vmem>>, vector<8x10xf32>
    tpu.vector_store %arg10[%c0_23, %c0_24], %27 {strides = array<i32>} : memref<8x10xf32, #tpu.memory_space<vmem>>, vector<8x10xf32>,
    return
  }
  func.func @transform_0(%arg0: i32) -> (i32, i32) {
    %c0_i32 = arith.constant 0 : i32
    %c0_i32_0 = arith.constant 0 : i32
    return %arg0, %c0_i32 : i32, i32
  }
  func.func @transform_1(%arg0: i32) -> (i32, i32) {
    %c0_i32 = arith.constant 0 : i32
    %c0_i32_0 = arith.constant 0 : i32
    %c0_i32_1 = arith.constant 0 : i32
    return %c0_i32, %c0_i32_0 : i32, i32
  }
  func.func @transform_2(%arg0: i32) -> (i32, i32) {
    %c0_i32 = arith.constant 0 : i32
    %c0_i32_0 = arith.constant 0 : i32
    %c0_i32_1 = arith.constant 0 : i32
    return %c0_i32, %c0_i32_0 : i32, i32
  }
  func.func @transform_3(%arg0: i32) -> (i32, i32) {
    %c0_i32 = arith.constant 0 : i32
    %c0_i32_0 = arith.constant 0 : i32
    %c0_i32_1 = arith.constant 0 : i32
    return %c0_i32, %c0_i32_0 : i32, i32
  }
  func.func @transform_4(%arg0: i32) -> (i32, i32) {
    %c0_i32 = arith.constant 0 : i32
    %c0_i32_0 = arith.constant 0 : i32
    %c0_i32_1 = arith.constant 0 : i32
    return %c0_i32, %c0_i32_0 : i32, i32
  }
  func.func @transform_5(%arg0: i32) -> (i32, i32) {
    %c0_i32 = arith.constant 0 : i32
    %c0_i32_0 = arith.constant 0 : i32
    %c0_i32_1 = arith.constant 0 : i32
    return %c0_i32, %c0_i32_0 : i32, i32
  }
  func.func @transform_6(%arg0: i32) -> (i32, i32) {
    %c0_i32 = arith.constant 0 : i32
    %c0_i32_0 = arith.constant 0 : i32
    %c0_i32_1 = arith.constant 0 : i32
    return %c0_i32, %c0_i32_0 : i32, i32
  }
  func.func @transform_7(%arg0: i32) -> (i32, i32) {
    %c0_i32 = arith.constant 0 : i32
    %c0_i32_0 = arith.constant 0 : i32
    return %arg0, %c0_i32 : i32, i32
  }
  func.func @transform_8(%arg0: i32) -> (i32, i32) {
    %c0_i32 = arith.constant 0 : i32
    %c0_i32_0 = arith.constant 0 : i32
    return %arg0, %c0_i32 : i32, i32
  }
  func.func @transform_9(%arg0: i32) -> (i32, i32) {
    %c0_i32 = arith.constant 0 : i32
    %c0_i32_0 = arith.constant 0 : i32
    return %arg0, %c0_i32 : i32, i32
  }
}

</mosaic_0001>

<llo_original>
// kernel: tpu_custom_call.1
$region0: #{tpu_custom_call.1}
  #allocation0 [shape = 'u32[]', space=smem, size = 0x4, offset = 0x4, fixed_abs, tag = 'smem constant byte address 0x4 - core index']
  #allocation1 [shape = 'u32[144,128]{1,0:T(1,128)}', space=vmem, size = 0x12000, scoped, tag = 'internal scratch']
  %s0 = inlined_call_operand.vmem [shape: f32[8,256], index: 0, kind: input, shape index: {}]
  %s1 = inlined_call_operand.vmem [shape: f32[256,160], index: 1, kind: input, shape index: {}]
  %s2 = inlined_call_operand.vmem [shape: f32[1,160], index: 2, kind: input, shape index: {}]
  %s3 = inlined_call_operand.vmem [shape: f32[160,80], index: 3, kind: input, shape index: {}]
  %s4 = inlined_call_operand.vmem [shape: f32[1,80], index: 4, kind: input, shape index: {}]
  %s5 = inlined_call_operand.vmem [shape: f32[80,10], index: 5, kind: input, shape index: {}]
  %s6 = inlined_call_operand.vmem [shape: f32[1,10], index: 6, kind: input, shape index: {}]
  %s7 = inlined_call_operand.hbm [shape: f32[8,160], index: 7, kind: output, shape index: {0}]
  %s8 = inlined_call_operand.hbm [shape: f32[8,80], index: 8, kind: output, shape index: {1}]
  %s9 = inlined_call_operand.hbm [shape: f32[8,10], index: 9, kind: output, shape index: {2}]
  %10 = xla_tuple %s7, %s8, %s9
  %s11 = sld [smem:[#allocation0]]
  $region54: #{tpu_custom_call.1} parent=0
    _
  %s13 = ssub.s32 1, %s11
  %s14 = scalar_select 0, %s13, %s11
  $region1: #{tpu_custom_call.1} parent=0
    #allocation2 [shape = 'u8[8192]{0}', space=vmem, size = 0x2000, scoped, tag = 'output window, operand 0, single buffered']
    #allocation3 [shape = 's32[1]{0}', space=sflag, size = 0x4, scoped, tag = 'scoped memory for tpu_custom_call.1']
    #allocation4 [shape = 'u8[4096]{0}', space=vmem, size = 0x1000, scoped, tag = 'output window, operand 1, single buffered']
    #allocation5 [shape = 's32[1]{0}', space=sflag, size = 0x4, scoped, tag = 'scoped memory for tpu_custom_call.1']
    #allocation6 [shape = 'u8[4096]{0}', space=vmem, size = 0x1000, scoped, tag = 'output window, operand 2, single buffered']
    %15 = vsyncpa [#allocation3], 0
    %16 = vsyncpa [#allocation5], 0
    // Predicated region
    $region2: #{tpu_custom_call.1} parent=1 // pred_check
      _
    $region3: #{tpu_custom_call.1} parent=1 // pred_check_branch
      %18 = sbr.rel (0) target = $region5
    $region4: #{tpu_custom_call.1} parent=1 // pred_region
      _
    $region5: #{tpu_custom_call.1} parent=1 // pred_fallthru
      _
    // Predicated region
    $region6: #{tpu_custom_call.1} parent=1 // pred_check
      _
    $region7: #{tpu_custom_call.1} parent=1 // pred_check_branch
      %20 = sbr.rel (0) target = $region9
    $region8: #{tpu_custom_call.1} parent=1 // pred_region
      _
    $region9: #{tpu_custom_call.1} parent=1 // pred_fallthru
      _
    // Predicated region
    $region10: #{tpu_custom_call.1} parent=1 // pred_check
      _
    $region11: #{tpu_custom_call.1} parent=1 // pred_check_branch
      %22 = sbr.rel (0) target = $region13
    $region12: #{tpu_custom_call.1} parent=1 // pred_region
      _
    $region13: #{tpu_custom_call.1} parent=1 // pred_fallthru
      _
    // Predicated region
    $region14: #{tpu_custom_call.1} parent=1 // pred_check
      _
    $region15: #{tpu_custom_call.1} parent=1 // pred_check_branch
      %24 = sbr.rel (0) target = $region17
    $region16: #{tpu_custom_call.1} parent=1 // pred_region
      _
    $region17: #{tpu_custom_call.1} parent=1 // pred_fallthru
      _
    // Predicated region
    $region18: #{tpu_custom_call.1} parent=1 // pred_check
      _
    $region19: #{tpu_custom_call.1} parent=1 // pred_check_branch
      %26 = sbr.rel (0) target = $region21
    $region20: #{tpu_custom_call.1} parent=1 // pred_region
      _
    $region21: #{tpu_custom_call.1} parent=1 // pred_fallthru
      _
    // Predicated region
    $region22: #{tpu_custom_call.1} parent=1 // pred_check
      _
    $region23: #{tpu_custom_call.1} parent=1 // pred_check_branch
      %28 = sbr.rel (0) target = $region25
    $region24: #{tpu_custom_call.1} parent=1 // pred_region
      _
    $region25: #{tpu_custom_call.1} parent=1 // pred_fallthru
      _
    // Predicated region
    $region26: #{tpu_custom_call.1} parent=1 // pred_check
      _
    $region27: #{tpu_custom_call.1} parent=1 // pred_check_branch
      %30 = sbr.rel (0) target = $region29
    $region28: #{tpu_custom_call.1} parent=1 // pred_region
      _
    $region29: #{tpu_custom_call.1} parent=1 // pred_fallthru
      _
    %v31 = vld [vmem:[%s0] sm:$0xff]
    %v32 = vld [vmem:[%s0 + $0x8] sm:$0xff]
    %v33 = vld [vmem:[%s1] sm:$0xff]
    %v34 = vld [vmem:[%s1 + $0x8] sm:$0xff]
    %v35 = vld [vmem:[%s1 + $0x10] sm:$0xff]
    %v36 = vld [vmem:[%s1 + $0x18] sm:$0xff]
    %v37 = vld [vmem:[%s1 + $0x20] sm:$0xff]
    %v38 = vld [vmem:[%s1 + $0x28] sm:$0xff]
    %v39 = vld [vmem:[%s1 + $0x30] sm:$0xff]
    %v40 = vld [vmem:[%s1 + $0x38] sm:$0xff]
    %v41 = vld [vmem:[%s1 + $0x40] sm:$0xff]
    %v42 = vld [vmem:[%s1 + $0x48] sm:$0xff]
    %v43 = vld [vmem:[%s1 + $0x50] sm:$0xff]
    %v44 = vld [vmem:[%s1 + $0x58] sm:$0xff]
    %v45 = vld [vmem:[%s1 + $0x60] sm:$0xff]
    %v46 = vld [vmem:[%s1 + $0x68] sm:$0xff]
    %v47 = vld [vmem:[%s1 + $0x70] sm:$0xff]
    %v48 = vld [vmem:[%s1 + $0x78] sm:$0xff]
    %v49 = vld [vmem:[%s1 + $0x80] sm:$0xff]
    %v50 = vld [vmem:[%s1 + $0x88] sm:$0xff]
    %v51 = vld [vmem:[%s1 + $0x90] sm:$0xff]
    %v52 = vld [vmem:[%s1 + $0x98] sm:$0xff]
    %v53 = vld [vmem:[%s1 + $0xa0] sm:$0xff]
    %v54 = vld [vmem:[%s1 + $0xa8] sm:$0xff]
    %v55 = vld [vmem:[%s1 + $0xb0] sm:$0xff]
    %v56 = vld [vmem:[%s1 + $0xb8] sm:$0xff]
    %v57 = vld [vmem:[%s1 + $0xc0] sm:$0xff]
    %v58 = vld [vmem:[%s1 + $0xc8] sm:$0xff]
    %v59 = vld [vmem:[%s1 + $0xd0] sm:$0xff]
    %v60 = vld [vmem:[%s1 + $0xd8] sm:$0xff]
    %v61 = vld [vmem:[%s1 + $0xe0] sm:$0xff]
    %v62 = vld [vmem:[%s1 + $0xe8] sm:$0xff]
    %v63 = vld [vmem:[%s1 + $0xf0] sm:$0xff]
    %v64 = vld [vmem:[%s1 + $0xf8] sm:$0xff]
    %v65 = vld [vmem:[%s1 + $0x100] sm:$0xff]
    %v66 = vld [vmem:[%s1 + $0x108] sm:$0xff]
    %v67 = vld [vmem:[%s1 + $0x110] sm:$0xff]
    %v68 = vld [vmem:[%s1 + $0x118] sm:$0xff]
    %v69 = vld [vmem:[%s1 + $0x120] sm:$0xff]
    %v70 = vld [vmem:[%s1 + $0x128] sm:$0xff]
    %v71 = vld [vmem:[%s1 + $0x130] sm:$0xff]
    %v72 = vld [vmem:[%s1 + $0x138] sm:$0xff]
    %v73 = vld [vmem:[%s1 + $0x140] sm:$0xff]
    %v74 = vld [vmem:[%s1 + $0x148] sm:$0xff]
    %v75 = vld [vmem:[%s1 + $0x150] sm:$0xff]
    %v76 = vld [vmem:[%s1 + $0x158] sm:$0xff]
    %v77 = vld [vmem:[%s1 + $0x160] sm:$0xff]
    %v78 = vld [vmem:[%s1 + $0x168] sm:$0xff]
    %v79 = vld [vmem:[%s1 + $0x170] sm:$0xff]
    %v80 = vld [vmem:[%s1 + $0x178] sm:$0xff]
    %v81 = vld [vmem:[%s1 + $0x180] sm:$0xff]
    %v82 = vld [vmem:[%s1 + $0x188] sm:$0xff]
    %v83 = vld [vmem:[%s1 + $0x190] sm:$0xff]
    %v84 = vld [vmem:[%s1 + $0x198] sm:$0xff]
    %v85 = vld [vmem:[%s1 + $0x1a0] sm:$0xff]
    %v86 = vld [vmem:[%s1 + $0x1a8] sm:$0xff]
    %v87 = vld [vmem:[%s1 + $0x1b0] sm:$0xff]
    %v88 = vld [vmem:[%s1 + $0x1b8] sm:$0xff]
    %v89 = vld [vmem:[%s1 + $0x1c0] sm:$0xff]
    %v90 = vld [vmem:[%s1 + $0x1c8] sm:$0xff]
    %v91 = vld [vmem:[%s1 + $0x1d0] sm:$0xff]
    %v92 = vld [vmem:[%s1 + $0x1d8] sm:$0xff]
    %v93 = vld [vmem:[%s1 + $0x1e0] sm:$0xff]
    %v94 = vld [vmem:[%s1 + $0x1e8] sm:$0xff]
    %v95 = vld [vmem:[%s1 + $0x1f0] sm:$0xff]
    %v96 = vld [vmem:[%s1 + $0x1f8] sm:$0xff]
    %v97 = vld [vmem:[%s2] sm:$0x3]
    %v99 = vlaneseq
    %v100 = vshrl.u32 %v99, 7
    %v101 = vsub.s32 0, %v100
    %v102 = vrot.slane %v97, %v101
    %v103 = vlaneseq
    %v104 = vshrl.u32 %v103, 7
    %v105 = vsub.s32 1, %v104
    %v106 = vrot.slane %v97, %v105
    %109 = vmatprep.subr.mxu0 %v34
    %110 = vmatpush1.msra.mxu0 %v33
    %111 = vmatprep.subr.mxu0 %v36
    %112 = vmatpush1.msra.mxu0 %v35
    %113 = vmatprep.subr.mxu0 %v38
    %114 = vmatpush1.msra.mxu0 %v37
    %115 = vmatprep.subr.mxu0 %v40
    %116 = vmatpush1.msra.mxu0 %v39
    %117 = vmatprep.subr.mxu0 %v42
    %118 = vmatpush1.msra.mxu0 %v41
    %119 = vmatprep.subr.mxu0 %v44
    %120 = vmatpush1.msra.mxu0 %v43
    %121 = vmatprep.subr.mxu0 %v46
    %122 = vmatpush1.msra.mxu0 %v45
    %123 = vmatprep.subr.mxu0 %v48
    %124 = vmatpush1.msra.mxu0 %v47
    %125 = vmatprep.subr.mxu0 %v50
    %126 = vmatpush1.msra.mxu0 %v49
    %127 = vmatprep.subr.mxu0 %v52
    %128 = vmatpush1.msra.mxu0 %v51
    %129 = vmatprep.subr.mxu0 %v54
    %130 = vmatpush1.msra.mxu0 %v53
    %131 = vmatprep.subr.mxu0 %v56
    %132 = vmatpush1.msra.mxu0 %v55
    %133 = vmatprep.subr.mxu0 %v58
    %134 = vmatpush1.msra.mxu0 %v57
    %135 = vmatprep.subr.mxu0 %v60
    %136 = vmatpush1.msra.mxu0 %v59
    %137 = vmatprep.subr.mxu0 %v62
    %138 = vmatpush1.msra.mxu0 %v61
    %139 = vmatprep.subr.mxu0 %v64
    %140 = vmatpush1.msra.mxu0 %v63
    %141 = vmatprep.subr.mxu0 %v66
    %142 = vmatpush1.msra.mxu0 %v65
    %143 = vmatprep.subr.mxu0 %v68
    %144 = vmatpush1.msra.mxu0 %v67
    %145 = vmatprep.subr.mxu0 %v70
    %146 = vmatpush1.msra.mxu0 %v69
    %147 = vmatprep.subr.mxu0 %v72
    %148 = vmatpush1.msra.mxu0 %v71
    %149 = vmatprep.subr.mxu0 %v74
    %150 = vmatpush1.msra.mxu0 %v73
    %151 = vmatprep.subr.mxu0 %v76
    %152 = vmatpush1.msra.mxu0 %v75
    %153 = vmatprep.subr.mxu0 %v78
    %154 = vmatpush1.msra.mxu0 %v77
    %155 = vmatprep.subr.mxu0 %v80
    %156 = vmatpush1.msra.mxu0 %v79
    %157 = vmatprep.subr.mxu0 %v82
    %158 = vmatpush1.msra.mxu0 %v81
    %159 = vmatprep.subr.mxu0 %v84
    %160 = vmatpush1.msra.mxu0 %v83
    %161 = vmatprep.subr.mxu0 %v86
    %162 = vmatpush1.msra.mxu0 %v85
    %163 = vmatprep.subr.mxu0 %v88
    %164 = vmatpush1.msra.mxu0 %v87
    %165 = vmatprep.subr.mxu0 %v90
    %166 = vmatpush1.msra.mxu0 %v89
    %167 = vmatprep.subr.mxu0 %v92
    %168 = vmatpush1.msra.mxu0 %v91
    %169 = vmatprep.subr.mxu0 %v94
    %170 = vmatpush1.msra.mxu0 %v93
    %171 = vmatprep.subr.mxu0 %v96
    %172 = vmatpush1.msra.mxu0 %v95
    %173 = vmatprep.mubr.f32.mxu0 %v32
    %174 = vmatmul.mubr.f32.gmra.mrb[0].mxu0 %v31
    %v175 = vpop.f32.mrb[0].mxu0
    %v176 = vadd.f32 %v102, %v175
    %v177 = vpop.f32.mrb[0].mxu0
    %v178 = vadd.f32 %v106, %v177
    %179 = vdwg.mxu0
    %v180 = vmax.f32 %v176, 0.0
    %v181 = vmax.f32 %v178, 0.0
    %182 = vst [vmem:[#allocation2] sm:$0xff] %v180
    %vm183 = vcmask 261120
    %184 = vst.msk [vmem:[#allocation2 + $0x8] sm:$0xff] %vm183, %v181
    %v185 = vld [vmem:[%s3] sm:$0xff]
    %v186 = vld [vmem:[%s3 + $0x8] sm:$0xff]
    %v187 = vld [vmem:[%s3 + $0x10] sm:$0xff]
    %v188 = vld [vmem:[%s3 + $0x18] sm:$0xff]
    %v189 = vld [vmem:[%s3 + $0x20] sm:$0xff]
    %v190 = vld [vmem:[%s3 + $0x28] sm:$0xff]
    %v191 = vld [vmem:[%s3 + $0x30] sm:$0xff]
    %v192 = vld [vmem:[%s3 + $0x38] sm:$0xff]
    %v193 = vld [vmem:[%s3 + $0x40] sm:$0xff]
    %v194 = vld [vmem:[%s3 + $0x48] sm:$0xff]
    %v195 = vld [vmem:[%s3 + $0x50] sm:$0xff]
    %v196 = vld [vmem:[%s3 + $0x58] sm:$0xff]
    %v197 = vld [vmem:[%s3 + $0x60] sm:$0xff]
    %v198 = vld [vmem:[%s3 + $0x68] sm:$0xff]
    %v199 = vld [vmem:[%s3 + $0x70] sm:$0xff]
    %v200 = vld [vmem:[%s3 + $0x78] sm:$0xff]
    %v201 = vld [vmem:[%s3 + $0x80] sm:$0xff]
    %v202 = vld [vmem:[%s3 + $0x88] sm:$0xff]
    %v203 = vld [vmem:[%s3 + $0x90] sm:$0xff]
    %v204 = vld [vmem:[%s3 + $0x98] sm:$0xff]
    %v205 = vld [vmem:[%s4] sm:$0x1]
    %v207 = vlaneseq
    %v208 = vshrl.u32 %v207, 7
    %v209 = vsub.s32 0, %v208
    %v210 = vrot.slane %v205, %v209
    %v213 = vsel %vm183, %v181, 0
    %215 = vmatprep.subr.mxu0 0.0
    %216 = vmatpush1.msra.mxu0 %v185
    %217 = vmatprep.subr.mxu0 0.0
    %218 = vmatpush1.msra.mxu0 %v186
    %219 = vmatprep.subr.mxu0 0.0
    %220 = vmatpush1.msra.mxu0 %v187
    %221 = vmatprep.subr.mxu0 0.0
    %222 = vmatpush1.msra.mxu0 %v188
    %223 = vmatprep.subr.mxu0 0.0
    %224 = vmatpush1.msra.mxu0 %v189
    %225 = vmatprep.subr.mxu0 0.0
    %226 = vmatpush1.msra.mxu0 %v190
    %227 = vmatprep.subr.mxu0 0.0
    %228 = vmatpush1.msra.mxu0 %v191
    %229 = vmatprep.subr.mxu0 0.0
    %230 = vmatpush1.msra.mxu0 %v192
    %231 = vmatprep.subr.mxu0 0.0
    %232 = vmatpush1.msra.mxu0 %v193
    %233 = vmatprep.subr.mxu0 0.0
    %234 = vmatpush1.msra.mxu0 %v194
    %235 = vmatprep.subr.mxu0 0.0
    %236 = vmatpush1.msra.mxu0 %v195
    %237 = vmatprep.subr.mxu0 0.0
    %238 = vmatpush1.msra.mxu0 %v196
    %239 = vmatprep.subr.mxu0 0.0
    %240 = vmatpush1.msra.mxu0 %v197
    %241 = vmatprep.subr.mxu0 0.0
    %242 = vmatpush1.msra.mxu0 %v198
    %243 = vmatprep.subr.mxu0 0.0
    %244 = vmatpush1.msra.mxu0 %v199
    %245 = vmatprep.subr.mxu0 0.0
    %246 = vmatpush1.msra.mxu0 %v200
    %247 = vmatprep.subr.mxu0 0.0
    %248 = vmatpush1.msra.mxu0 %v201
    %249 = vmatprep.subr.mxu0 0.0
    %250 = vmatpush1.msra.mxu0 %v202
    %251 = vmatprep.subr.mxu0 0.0
    %252 = vmatpush1.msra.mxu0 %v203
    %253 = vmatprep.subr.mxu0 0.0
    %254 = vmatpush1.msra.mxu0 %v204
    %255 = vmatprep.subr.mxu0 0.0
    %256 = vmatpush1.msra.mxu0 0.0
    %257 = vmatprep.subr.mxu0 0.0
    %258 = vmatpush1.msra.mxu0 0.0
    %259 = vmatprep.subr.mxu0 0.0
    %260 = vmatpush1.msra.mxu0 0.0
    %261 = vmatprep.subr.mxu0 0.0
    %262 = vmatpush1.msra.mxu0 0.0
    %263 = vmatprep.subr.mxu0 0.0
    %264 = vmatpush1.msra.mxu0 0.0
    %265 = vmatprep.subr.mxu0 0.0
    %266 = vmatpush1.msra.mxu0 0.0
    %267 = vmatprep.subr.mxu0 0.0
    %268 = vmatpush1.msra.mxu0 0.0
    %269 = vmatprep.subr.mxu0 0.0
    %270 = vmatpush1.msra.mxu0 0.0
    %271 = vmatprep.subr.mxu0 0.0
    %272 = vmatpush1.msra.mxu0 0.0
    %273 = vmatprep.subr.mxu0 0.0
    %274 = vmatpush1.msra.mxu0 0.0
    %275 = vmatprep.subr.mxu0 0.0
    %276 = vmatpush1.msra.mxu0 0.0
    %277 = vmatprep.subr.mxu0 0.0
    %278 = vmatpush1.msra.mxu0 0.0
    %279 = vmatprep.mubr.f32.mxu0 %v213
    %280 = vmatmul.mubr.f32.gmra.mrb[0].mxu0 %v180
    %v281 = vpop.f32.mrb[0].mxu0
    %v282 = vadd.f32 %v210, %v281
    %v283 = vpop.f32.mrb[0].mxu0
    %284 = vdwg.mxu0
    %v285 = vmax.f32 %v282, 0.0
    %vm286 = vcmask 654336
    %287 = vst.msk [vmem:[#allocation4] sm:$0xff] %vm286, %v285
    %v288 = vld [vmem:[%s5] sm:$0xff]
    %v289 = vld [vmem:[%s5 + $0x8] sm:$0xff]
    %v290 = vld [vmem:[%s5 + $0x10] sm:$0xff]
    %v291 = vld [vmem:[%s5 + $0x18] sm:$0xff]
    %v292 = vld [vmem:[%s5 + $0x20] sm:$0xff]
    %v293 = vld [vmem:[%s5 + $0x28] sm:$0xff]
    %v294 = vld [vmem:[%s5 + $0x30] sm:$0xff]
    %v295 = vld [vmem:[%s5 + $0x38] sm:$0xff]
    %v296 = vld [vmem:[%s5 + $0x40] sm:$0xff]
    %v297 = vld [vmem:[%s5 + $0x48] sm:$0xff]
    %v298 = vld [vmem:[%s6] sm:$0x1]
    %v300 = vlaneseq
    %v301 = vshrl.u32 %v300, 7
    %v302 = vsub.s32 0, %v301
    %v303 = vrot.slane %v298, %v302
    %v306 = vsel %vm286, %v285, 0
    %308 = vmatprep.subr.mxu0 0.0
    %309 = vmatpush1.msra.mxu0 %v288
    %310 = vmatprep.subr.mxu0 0.0
    %311 = vmatpush1.msra.mxu0 %v289
    %312 = vmatprep.subr.mxu0 0.0
    %313 = vmatpush1.msra.mxu0 %v290
    %314 = vmatprep.subr.mxu0 0.0
    %315 = vmatpush1.msra.mxu0 %v291
    %316 = vmatprep.subr.mxu0 0.0
    %317 = vmatpush1.msra.mxu0 %v292
    %318 = vmatprep.subr.mxu0 0.0
    %319 = vmatpush1.msra.mxu0 %v293
    %320 = vmatprep.subr.mxu0 0.0
    %321 = vmatpush1.msra.mxu0 %v294
    %322 = vmatprep.subr.mxu0 0.0
    %323 = vmatpush1.msra.mxu0 %v295
    %324 = vmatprep.subr.mxu0 0.0
    %325 = vmatpush1.msra.mxu0 %v296
    %326 = vmatprep.subr.mxu0 0.0
    %327 = vmatpush1.msra.mxu0 %v297
    %328 = vmatprep.subr.mxu0 0.0
    %329 = vmatpush1.msra.mxu0 0.0
    %330 = vmatprep.subr.mxu0 0.0
    %331 = vmatpush1.msra.mxu0 0.0
    %332 = vmatprep.subr.mxu0 0.0
    %333 = vmatpush1.msra.mxu0 0.0
    %334 = vmatprep.subr.mxu0 0.0
    %335 = vmatpush1.msra.mxu0 0.0
    %336 = vmatprep.subr.mxu0 0.0
    %337 = vmatpush1.msra.mxu0 0.0
    %338 = vmatprep.subr.mxu0 0.0
    %339 = vmatpush1.msra.mxu0 0.0
    %340 = vmatprep.subr.mxu0 0.0
    %341 = vmatpush1.msra.mxu0 0.0
    %342 = vmatprep.subr.mxu0 0.0
    %343 = vmatpush1.msra.mxu0 0.0
    %344 = vmatprep.subr.mxu0 0.0
    %345 = vmatpush1.msra.mxu0 0.0
    %346 = vmatprep.subr.mxu0 0.0
    %347 = vmatpush1.msra.mxu0 0.0
    %348 = vmatprep.subr.mxu0 0.0
    %349 = vmatpush1.msra.mxu0 0.0
    %350 = vmatprep.subr.mxu0 0.0
    %351 = vmatpush1.msra.mxu0 0.0
    %352 = vmatprep.subr.mxu0 0.0
    %353 = vmatpush1.msra.mxu0 0.0
    %354 = vmatprep.subr.mxu0 0.0
    %355 = vmatpush1.msra.mxu0 0.0
    %356 = vmatprep.subr.mxu0 0.0
    %357 = vmatpush1.msra.mxu0 0.0
    %358 = vmatprep.subr.mxu0 0.0
    %359 = vmatpush1.msra.mxu0 0.0
    %360 = vmatprep.subr.mxu0 0.0
    %361 = vmatpush1.msra.mxu0 0.0
    %362 = vmatprep.subr.mxu0 0.0
    %363 = vmatpush1.msra.mxu0 0.0
    %364 = vmatprep.subr.mxu0 0.0
    %365 = vmatpush1.msra.mxu0 0.0
    %366 = vmatprep.subr.mxu0 0.0
    %367 = vmatpush1.msra.mxu0 0.0
    %368 = vmatprep.subr.mxu0 0.0
    %369 = vmatpush1.msra.mxu0 0.0
    %370 = vmatprep.subr.mxu0 0.0
    %371 = vmatpush1.msra.mxu0 0.0
    %372 = vmatprep.mubr.f32.mxu0 0.0
    %373 = vmatmul.mubr.f32.gmra.mrb[0].mxu0 %v306
    %v374 = vpop.f32.mrb[0].mxu0
    %v375 = vadd.f32 %v303, %v374
    %v376 = vpop.f32.mrb[0].mxu0
    %377 = vdwg.mxu0
    %v378 = vsub.f32 0.0, %v375
    %v379 = vmul.f32 %v378, 1.442695
    %v380 = vpow.pop %v379
    %v381 = vadd.f32 %v380, 1.0
    %v382 = vrcp.pop %v381
    %vm383 = vcmask 80896
    %384 = vst.msk [vmem:[#allocation6] sm:$0xff] %vm383, %v382
    // Predicated region
    $region30: #{tpu_custom_call.1} parent=1 // pred_check
      _
    $region31: #{tpu_custom_call.1} parent=1 // pred_check_branch
      %386 = sbr.rel (0) target = $region33
    $region32: #{tpu_custom_call.1} parent=1 // pred_region
      %s388 = ssub.s32 256, 256
      %389 = vsyncadd [#allocation3], %s388
      %s391 = sshll.u32 [#allocation2], 4
      %s392 = int_to_ptr.vmem [resolvable:$true] %s391
      %394 = dma.vmem_to_hbm [thread:$0]  %s392, 256, %s7, [#allocation3]
    $region33: #{tpu_custom_call.1} parent=1 // pred_fallthru
      _
    // Predicated region
    $region34: #{tpu_custom_call.1} parent=1 // pred_check
      _
    $region35: #{tpu_custom_call.1} parent=1 // pred_check_branch
      %396 = sbr.rel (0) target = $region37
    $region36: #{tpu_custom_call.1} parent=1 // pred_region
      %s398 = ssub.s32 128, 128
      %399 = vsyncadd [#allocation5], %s398
      %s401 = sshll.u32 [#allocation4], 4
      %s402 = int_to_ptr.vmem [resolvable:$true] %s401
      %404 = dma.vmem_to_hbm [thread:$0]  %s402, 128, %s8, [#allocation5]
    $region37: #{tpu_custom_call.1} parent=1 // pred_fallthru
      _
    // Predicated region
    $region38: #{tpu_custom_call.1} parent=1 // pred_check
      _
    $region39: #{tpu_custom_call.1} parent=1 // pred_check_branch
      %406 = sbr.rel (0) target = $region41
    $region40: #{tpu_custom_call.1} parent=1 // pred_region
      %s408 = ssub.s32 128, 128
      %409 = vsyncadd [#allocation5], %s408
      %s411 = sshll.u32 [#allocation6], 4
      %s412 = int_to_ptr.vmem [resolvable:$true] %s411
      %414 = dma.vmem_to_hbm [thread:$0]  %s412, 128, %s9, [#allocation5]
    $region41: #{tpu_custom_call.1} parent=1 // pred_fallthru
      _
    // Predicated region
    $region42: #{tpu_custom_call.1} parent=1 // pred_check
      _
    $region43: #{tpu_custom_call.1} parent=1 // pred_check_branch
      %416 = sbr.rel (0) target = $region45
    $region44: #{tpu_custom_call.1} parent=1 // pred_region
      %417 = dma.done [#allocation3], 256
    $region45: #{tpu_custom_call.1} parent=1 // pred_fallthru
      _
    // Predicated region
    $region46: #{tpu_custom_call.1} parent=1 // pred_check
      _
    $region47: #{tpu_custom_call.1} parent=1 // pred_check_branch
      %419 = sbr.rel (0) target = $region49
    $region48: #{tpu_custom_call.1} parent=1 // pred_region
      %420 = dma.done [#allocation5], 128
    $region49: #{tpu_custom_call.1} parent=1 // pred_fallthru
      _
    // Predicated region
    $region50: #{tpu_custom_call.1} parent=1 // pred_check
      _
    $region51: #{tpu_custom_call.1} parent=1 // pred_check_branch
      %422 = sbr.rel (0) target = $region53
    $region52: #{tpu_custom_call.1} parent=1 // pred_region
      %423 = dma.done [#allocation5], 128
    $region53: #{tpu_custom_call.1} parent=1 // pred_fallthru
      _
    %424 = vsyncpa [#allocation3], 1
    %425 = vsyncpa [#allocation5], 1

</llo_original>
